<compile_context>
chip_gen: v5e
topology: v5e:2x2
jax: 0.10.0
libtpu: 0.0.40
codegen_flags: <defaults>
</compile_context>

<pallas_src>
import functools
import math

import jax
import jax.numpy as jnp
from jax import lax
from jax.experimental import pallas as pl
from jax.experimental.pallas import tpu as pltpu


_NEG_INF = -1e30  # big finite negative: avoids inf-inf NaNs in the online softmax


def _flash_attention_kernel(q_ref, k_ref, v_ref, o_ref, m_ref, l_ref, acc_ref,
                            *, ch, g, seq_len, kv_tile):
    """One (batch, head-group, q-tile, kv-tile) grid step.

    q_ref/k_ref/v_ref : (1, G*C, tq|tk) channels-first tiles of the packed qkv
    o_ref             : (1, G*C, tq) output tile (written on the last kv step)
    m_ref, l_ref      : (G, tq, 1) f32 running max / softmax denominator
    acc_ref           : (G, tq, C) f32 running weighted-value accumulator
    """
    ki = pl.program_id(3)
    nk = pl.num_programs(3)

    @pl.when(ki == 0)
    def _init():
        m_ref[...] = jnp.full_like(m_ref, _NEG_INF)
        l_ref[...] = jnp.zeros_like(l_ref)
        acc_ref[...] = jnp.zeros_like(acc_ref)

    tq = q_ref.shape[-1]
    tk = k_ref.shape[-1]

    # (G*C, t) -> (G, C, t), kept in the input dtype (bf16 stays bf16 on the MXU).
    q = q_ref[0].reshape(g, ch, tq)
    k = k_ref[0].reshape(g, ch, tk)
    v = v_ref[0].reshape(g, ch, tk)

    ragged = (seq_len % kv_tile) != 0
    if ragged:
        # Zero padded value columns so garbage in the partial last kv tile can
        # never leak (0 * NaN) into the PV accumulation.
        kv_pos_v = ki * kv_tile + lax.broadcasted_iota(jnp.int32, (g, ch, tk), 2)
        v = jnp.where(kv_pos_v < seq_len, v, jnp.zeros_like(v))

    # Scores: natural [tq, C] x [C, tk] MXU form (q transposed on the XLU).
    q_t = jnp.swapaxes(q, 1, 2)                                   # (G, tq, C)
    s = jnp.einsum('gtc,gcs->gts', q_t, k,
                   preferred_element_type=jnp.float32)            # (G, tq, tk) f32
    # == (q * ch**-0.25) . (k * ch**-0.25), applied once to the f32 scores.
    s = s * (1.0 / math.sqrt(ch))

    if ragged:
        kv_pos = ki * kv_tile + lax.broadcasted_iota(jnp.int32, s.shape, 2)
        s = jnp.where(kv_pos < seq_len, s, _NEG_INF)

    # --- online softmax update ---
    m_prev = m_ref[...]
    m_new = jnp.maximum(m_prev, jnp.max(s, axis=-1, keepdims=True))
    alpha = jnp.exp(m_prev - m_new)                               # (G, tq, 1)
    p = jnp.exp(s - m_new)                                        # (G, tq, tk) f32
    l_ref[...] = alpha * l_ref[...] + jnp.sum(p, axis=-1, keepdims=True)

    # PV: natural [tq, tk] x [tk, C] MXU form; probabilities go back to the value
    # dtype so bf16 inputs run on the bf16 MXU path (f32 accumulation).
    v_t = jnp.swapaxes(v, 1, 2)                                   # (G, tk, C)
    pv = jnp.einsum('gts,gsc->gtc', p.astype(v.dtype), v_t,
                    preferred_element_type=jnp.float32)           # (G, tq, C) f32
    acc_ref[...] = alpha * acc_ref[...] + pv
    m_ref[...] = m_new

    @pl.when(ki == nk - 1)
    def _finalize():
        inv_l = pl.reciprocal(l_ref[...], approx=True)            # EUP slot, ~free
        out = acc_ref[...] * inv_l                                # (G, tq, C) f32
        out = jnp.swapaxes(out, 1, 2).reshape(g * ch, tq)         # back to (G*C, tq)
        o_ref[0] = out.astype(o_ref.dtype)                        # lane-dense store


def _pick_head_group(n_heads, ch):
    """Heads processed per grid step.

    Small per-head channel counts underfill the MXU and make each step tiny vs.
    the ~0.35us grid-step overhead, so group heads until ~64 channel rows per
    step, keeping (G*C) % 8 == 0 for the sublane tiling constraint.
    """
    ok = [d for d in range(1, n_heads + 1)
          if n_heads % d == 0 and (d * ch) % 8 == 0]
    if not ok:
        raise ValueError(
            f"Cannot tile head channels: need a divisor g of n_heads={n_heads} "
            f"with (g * ch) % 8 == 0 (ch={ch}).")
    target = max(1, 64 // max(ch, 1))
    small = [d for d in ok if d <= target]
    return max(small) if small else min(ok)


def _tile_config(seq_len, ch, g, dtype, q_tile=None, kv_tile=None):
    """Per-generation tile sizes, kv buffering depth and scoped-VMEM limit."""
    kind = ""
    try:
        kind = jax.devices()[0].device_kind.lower()
    except Exception:
        pass
    old_mxu = any(v in kind for v in ("v2", "v3", "v4", "v5"))  # 128x128 MXUs
    mxu = 128 if old_mxu else 256                               # v6e/v7x: 256x256
    is_v5e = ("v5 lite" in kind) or ("v5e" in kind)

    # VMEM capacity (v7x has only 64 MiB per core; v5e/v6e have 128 MiB).
    vmem_cap = 64 * 1024 * 1024 if "v7" in kind else 128 * 1024 * 1024
    try:
        vmem_cap = int(getattr(pltpu.get_tpu_info(), "vmem_capacity_bytes", vmem_cap))
    except Exception:
        pass
    vmem_cap = min(vmem_cap, 128 * 1024 * 1024)

    if q_tile is None:
        q_tile = seq_len if seq_len <= mxu else mxu
    if kv_tile is None:
        if seq_len <= mxu:
            kv_tile = seq_len
        elif (not old_mxu) and seq_len >= 2 * mxu:
            kv_tile = 2 * mxu            # wider kv tiles on the 256x256-MXU chips
        else:
            kv_tile = mxu
    q_tile = min(q_tile, seq_len)
    kv_tile = min(kv_tile, seq_len)
    for t in (q_tile, kv_tile):
        assert t == seq_len or t % 128 == 0, \
            "sequence tiles must be multiples of 128 or the full sequence"

    kv_buffers = 3 if is_v5e else None    # deeper kv streaming hides v5e's HBM BW

    # Scoped-VMEM limit: generous headroom over the pipelined working set,
    # clipped against the chip's physical VMEM.
    item = jnp.dtype(dtype).itemsize
    blk_c = g * ch
    nbuf = kv_buffers if kv_buffers is not None else 2
    working_set = (
        2 * blk_c * q_tile * item                 # q tile (double buffered)
        + 2 * nbuf * blk_c * kv_tile * item       # k + v tiles
        + 2 * blk_c * q_tile * item               # output tile
        + 4 * g * q_tile * (ch + 2)               # f32 scratch: acc + m + l
        + 8 * g * q_tile * kv_tile)               # live f32 scores / probs
    vmem_limit = int(min(max(32 * 1024 * 1024, 4 * working_set),
                         int(0.9 * vmem_cap)))
    return q_tile, kv_tile, kv_buffers, vmem_limit


def qkv_attention(qkv, n_heads, *, q_tile=None, kv_tile=None, heads_per_step=None):
    """Pallas-TPU equivalent of torch QKVAttention.forward.

    qkv: [N, 3*H*C, T]  ->  [N, H*C, T]
    """
    bs, width, length = qkv.shape
    assert width % (3 * n_heads) == 0
    ch = width // (3 * n_heads)

    g = heads_per_step if heads_per_step is not None else _pick_head_group(n_heads, ch)
    assert n_heads % g == 0 and (g * ch) % 8 == 0
    n_hg = n_heads // g
    blk_c = g * ch

    tq, tk, kv_buffers, vmem_limit = _tile_config(
        length, ch, g, qkv.dtype, q_tile=q_tile, kv_tile=kv_tile)
    n_q = pl.cdiv(length, tq)
    n_k = pl.cdiv(length, tk)

    # q / k / v live at channel-block offsets 0, H/G, 2*H/G of the packed qkv:
    # the DMA engine does the torch "chunk(3, dim=1)" for free (no HBM copies).
    # q / out index_maps are constant in ki, so the q tile stays resident across
    # the whole kv reduction and the output is written back once per q tile.
    q_spec = pl.BlockSpec((1, blk_c, tq), lambda n, hg, qi, ki: (n, hg, qi))
    o_spec = pl.BlockSpec((1, blk_c, tq), lambda n, hg, qi, ki: (n, hg, qi))

    def _kv_spec(index_map):
        if kv_buffers is not None:
            try:  # deeper kv streaming (v5e: lower HBM bandwidth)
                return pl.BlockSpec((1, blk_c, tk), index_map,
                                    pipeline_mode=pl.Buffered(kv_buffers))
            except TypeError:
                pass
        return pl.BlockSpec((1, blk_c, tk), index_map)

    k_spec = _kv_spec(lambda n, hg, qi, ki: (n, n_hg + hg, ki))
    v_spec = _kv_spec(lambda n, hg, qi, ki: (n, 2 * n_hg + hg, ki))

    kernel = functools.partial(_flash_attention_kernel,
                               ch=ch, g=g, seq_len=length, kv_tile=tk)

    return pl.pallas_call(
        kernel,
        out_shape=jax.ShapeDtypeStruct((bs, n_heads * ch, length), qkv.dtype),
        grid_spec=pltpu.PrefetchScalarGridSpec(
            num_scalar_prefetch=0,
            grid=(bs, n_hg, n_q, n_k),            # kv (reduction) axis is last
            in_specs=[q_spec, k_spec, v_spec],
            out_specs=o_spec,
            scratch_shapes=[
                pltpu.VMEM((g, tq, 1), jnp.float32),    # running max
                pltpu.VMEM((g, tq, 1), jnp.float32),    # running denominator
                pltpu.VMEM((g, tq, ch), jnp.float32),   # running accumulator
            ],
        ),
        compiler_params=pltpu.CompilerParams(
            # batch / head-group / q-tile axes shard across TensorCores
            # (2 TCs on v7x); the kv reduction axis must stay "arbitrary".
            dimension_semantics=("parallel", "parallel", "parallel", "arbitrary"),
            vmem_limit_bytes=vmem_limit,
        ),
    )(qkv, qkv, qkv)


def _reference_qkv_attention(qkv, n_heads):
    """Pure-JAX reference mirroring the PyTorch module (f32 internals)."""
    bs, width, length = qkv.shape
    ch = width // (3 * n_heads)
    q, k, v = jnp.split(qkv.astype(jnp.float32), 3, axis=1)
    q = q.reshape(bs * n_heads, ch, length)
    k = k.reshape(bs * n_heads, ch, length)
    v = v.reshape(bs * n_heads, ch, length)
    scale = 1.0 / math.sqrt(math.sqrt(ch))
    w = jnp.einsum('bct,bcs->bts', q * scale, k * scale)
    w = jax.nn.softmax(w, axis=-1)
    a = jnp.einsum('bts,bcs->bct', w, v)
    return a.reshape(bs, -1, length)


if __name__ == "__main__":
    key = jax.random.PRNGKey(0)
    k1, k2 = jax.random.split(key)

    # --- Test 1: tiny shapes; small head dim exercises head-grouping (3 heads/step).
    n_heads, N, C, T = 3, 2, 8, 16                    # qkv width = 3*H*C = 72
    qkv = jax.random.normal(k1, (N, 3 * n_heads * C, T), dtype=jnp.float32)
    out = jax.block_until_ready(qkv_attention(qkv, n_heads))
    ref = _reference_qkv_attention(qkv, n_heads)
    assert out.shape == (N, n_heads * C, T)
    assert jnp.allclose(out, ref, atol=2e-3, rtol=2e-3), \
        float(jnp.max(jnp.abs(out - ref)))

    # --- Test 2: forced 128-wide tiles -> multiple q and kv blocks, exercising
    # the online-softmax accumulation across the kv grid axis.
    n_heads, N, C, T = 2, 1, 64, 256
    qkv = jax.random.normal(k2, (N, 3 * n_heads * C, T), dtype=jnp.float32)
    out = jax.block_until_ready(qkv_attention(qkv, n_heads, q_tile=128, kv_tile=128))
    ref = _reference_qkv_attention(qkv, n_heads)
    assert jnp.allclose(out, ref, atol=2e-3, rtol=2e-3), \
        float(jnp.max(jnp.abs(out - ref)))

    # --- Test 3: bf16 inputs stay bf16 on the MXU (f32 accumulation inside).
    qkv_bf16 = qkv.astype(jnp.bfloat16)
    out_bf16 = jax.block_until_ready(qkv_attention(qkv_bf16, n_heads))
    ref_bf16 = _reference_qkv_attention(qkv_bf16, n_heads)
    assert jnp.allclose(out_bf16.astype(jnp.float32), ref_bf16.astype(jnp.float32),
                        atol=5e-2, rtol=5e-2)

    print("KERNEL_OK")
</pallas_src>

<mosaic_0001>
module attributes {stable_mosaic.version = 11 : i64} {
  func.func @_flash_attention_kernel(%arg0: i32, %arg1: i32, %arg2: i32, %arg3: i32, %arg4: memref<1x24x16xf32, #tpu.memory_space<vmem>>, %arg5: memref<1x24x16xf32, #tpu.memory_space<vmem>>, %arg6: memref<1x24x16xf32, #tpu.memory_space<vmem>>, %arg7: memref<1x24x16xf32, #tpu.memory_space<vmem>>, %arg8: memref<3x16x1xf32, #tpu.memory_space<vmem>>, %arg9: memref<3x16x1xf32, #tpu.memory_space<vmem>>, %arg10: memref<3x16x8xf32, #tpu.memory_space<vmem>>) attributes {dimension_semantics = [#tpu.dimension_semantics<parallel>, #tpu.dimension_semantics<parallel>, #tpu.dimension_semantics<parallel>, #tpu.dimension_semantics<arbitrary>], iteration_bounds = array<i64: 2, 1, 1, 1>, scalar_prefetch = 0 : i64, scratch_operands = 3 : i64, tpu.core_type = #tpu.core_type<tc>, window_params = [{transform_indices = @transform_0, window_bounds = array<i64: 1, 24, 16>}, {transform_indices = @transform_1, window_bounds = array<i64: 1, 24, 16>}, {transform_indices = @transform_2, window_bounds = array<i64: 1, 24, 16>}, {transform_indices = @transform_3, window_bounds = array<i64: 1, 24, 16>}]} {
    %c0_i32 = arith.constant 0 : i32
    %0 = arith.cmpi eq, %arg3, %c0_i32 : i32
    %1 = arith.extui %0 : i1 to i32
    %c0_i32_0 = arith.constant 0 : i32
    %2 = arith.cmpi ne, %1, %c0_i32_0 : i32
    scf.if %2 {
      %cst_33 = arith.constant -1.000000e+30 : f32
      %42 = vector.broadcast %cst_33 : f32 to vector<3x16x1xf32>
      %c0_34 = arith.constant 0 : index
      %c0_35 = arith.constant 0 : index
      %c0_36 = arith.constant 0 : index
      %43 = vector.load %arg8[%c0_34, %c0_35, %c0_36] : memref<3x16x1xf32, #tpu.memory_space<vmem>>, vector<3x16x1xf32>
      tpu.vector_store %arg8[%c0_34, %c0_35, %c0_36], %42 {strides = array<i32>} : memref<3x16x1xf32, #tpu.memory_space<vmem>>, vector<3x16x1xf32>,
      %cst_37 = arith.constant 0.000000e+00 : f32
      %44 = vector.broadcast %cst_37 : f32 to vector<3x16x1xf32>
      %c0_38 = arith.constant 0 : index
      %c0_39 = arith.constant 0 : index
      %c0_40 = arith.constant 0 : index
      %45 = vector.load %arg9[%c0_38, %c0_39, %c0_40] : memref<3x16x1xf32, #tpu.memory_space<vmem>>, vector<3x16x1xf32>
      tpu.vector_store %arg9[%c0_38, %c0_39, %c0_40], %44 {strides = array<i32>} : memref<3x16x1xf32, #tpu.memory_space<vmem>>, vector<3x16x1xf32>,
      %cst_41 = arith.constant 0.000000e+00 : f32
      %46 = vector.broadcast %cst_41 : f32 to vector<3x16x8xf32>
      %c0_42 = arith.constant 0 : index
      %c0_43 = arith.constant 0 : index
      %c0_44 = arith.constant 0 : index
      %47 = vector.load %arg10[%c0_42, %c0_43, %c0_44] : memref<3x16x8xf32, #tpu.memory_space<vmem>>, vector<3x16x8xf32>
      tpu.vector_store %arg10[%c0_42, %c0_43, %c0_44], %46 {strides = array<i32>} : memref<3x16x8xf32, #tpu.memory_space<vmem>>, vector<3x16x8xf32>,
    } else {
    }
    %c0 = arith.constant 0 : index
    %c0_1 = arith.constant 0 : index
    %c0_2 = arith.constant 0 : index
    %3 = vector.load %arg4[%c0, %c0_1, %c0_2] : memref<1x24x16xf32, #tpu.memory_space<vmem>>, vector<1x24x16xf32>
    %4 = vector.shape_cast %3 : vector<1x24x16xf32> to vector<24x16xf32>
    %5 = vector.shape_cast %4 : vector<24x16xf32> to vector<3x8x16xf32>
    %c0_3 = arith.constant 0 : index
    %c0_4 = arith.constant 0 : index
    %c0_5 = arith.constant 0 : index
    %6 = vector.load %arg5[%c0_3, %c0_4, %c0_5] : memref<1x24x16xf32, #tpu.memory_space<vmem>>, vector<1x24x16xf32>
    %7 = vector.shape_cast %6 : vector<1x24x16xf32> to vector<24x16xf32>
    %8 = vector.shape_cast %7 : vector<24x16xf32> to vector<3x8x16xf32>
    %c0_6 = arith.constant 0 : index
    %c0_7 = arith.constant 0 : index
    %c0_8 = arith.constant 0 : index
    %9 = vector.load %arg6[%c0_6, %c0_7, %c0_8] : memref<1x24x16xf32, #tpu.memory_space<vmem>>, vector<1x24x16xf32>
    %10 = vector.shape_cast %9 : vector<1x24x16xf32> to vector<24x16xf32>
    %11 = vector.shape_cast %10 : vector<24x16xf32> to vector<3x8x16xf32>
    %12 = tpu.transpose %5, [0, 2, 1] : vector<3x8x16xf32> -> vector<3x16x8xf32>
    "tpu.trace_start"() <{level = 10 : i32, message = "gtc,gcs->gts"}> : () -> ()
    %cst = arith.constant dense<0.000000e+00> : vector<3x16x16xf32>
    %13 = tpu.matmul %12, %8, %cst {dimension_numbers = #tpu.dot_dimension_numbers<[2], [1], [1], [2], [0, 0, 0, 1, 1, 2], [0], [0]>} : vector<3x16x8xf32>, vector<3x8x16xf32>, vector<3x16x16xf32> -> vector<3x16x16xf32>
    "tpu.trace_stop"() : () -> ()
    %cst_9 = arith.constant 0.353553385 : f32
    %14 = vector.broadcast %cst_9 : f32 to vector<3x16x16xf32>
    %15 = arith.mulf %13, %14 : vector<3x16x16xf32>
    %c0_10 = arith.constant 0 : index
    %c0_11 = arith.constant 0 : index
    %c0_12 = arith.constant 0 : index
    %16 = vector.load %arg8[%c0_10, %c0_11, %c0_12] : memref<3x16x1xf32, #tpu.memory_space<vmem>>, vector<3x16x1xf32>
    %cst_13 = arith.constant dense<0xFF800000> : vector<3x16xf32>
    %17 = vector.multi_reduction <maximumf>, %15, %cst_13 [2] : vector<3x16x16xf32> to vector<3x16xf32>
    %18 = vector.shape_cast %17 : vector<3x16xf32> to vector<3x16x1xf32>
    %19 = arith.maximumf %16, %18 : vector<3x16x1xf32>
    %20 = arith.subf %16, %19 : vector<3x16x1xf32>
    %21 = math.exp %20 : vector<3x16x1xf32>
    %22 = vector.broadcast %19 : vector<3x16x1xf32> to vector<3x16x16xf32>
    %23 = arith.subf %15, %22 : vector<3x16x16xf32>
    %24 = math.exp %23 : vector<3x16x16xf32>
    %c0_14 = arith.constant 0 : index
    %c0_15 = arith.constant 0 : index
    %c0_16 = arith.constant 0 : index
    %25 = vector.load %arg9[%c0_14, %c0_15, %c0_16] : memref<3x16x1xf32, #tpu.memory_space<vmem>>, vector<3x16x1xf32>
    %26 = arith.mulf %21, %25 : vector<3x16x1xf32>
    %cst_17 = arith.constant dense<0.000000e+00> : vector<3x16xf32>
    %27 = vector.multi_reduction <add>, %24, %cst_17 [2] : vector<3x16x16xf32> to vector<3x16xf32>
    %28 = vector.shape_cast %27 : vector<3x16xf32> to vector<3x16x1xf32>
    %29 = arith.addf %26, %28 : vector<3x16x1xf32>
    %c0_18 = arith.constant 0 : index
    %c0_19 = arith.constant 0 : index
    %c0_20 = arith.constant 0 : index
    %30 = vector.load %arg9[%c0_18, %c0_19, %c0_20] : memref<3x16x1xf32, #tpu.memory_space<vmem>>, vector<3x16x1xf32>
    tpu.vector_store %arg9[%c0_18, %c0_19, %c0_20], %29 {strides = array<i32>} : memref<3x16x1xf32, #tpu.memory_space<vmem>>, vector<3x16x1xf32>,
    %31 = tpu.transpose %11, [0, 2, 1] : vector<3x8x16xf32> -> vector<3x16x8xf32>
    "tpu.trace_start"() <{level = 10 : i32, message = "gts,gsc->gtc"}> : () -> ()
    %cst_21 = arith.constant dense<0.000000e+00> : vector<3x16x8xf32>
    %32 = tpu.matmul %24, %31, %cst_21 {dimension_numbers = #tpu.dot_dimension_numbers<[2], [1], [1], [2], [0, 0, 0, 1, 1, 2], [0], [0]>} : vector<3x16x16xf32>, vector<3x16x8xf32>, vector<3x16x8xf32> -> vector<3x16x8xf32>
    "tpu.trace_stop"() : () -> ()
    %c0_22 = arith.constant 0 : index
    %c0_23 = arith.constant 0 : index
    %c0_24 = arith.constant 0 : index
    %33 = vector.load %arg10[%c0_22, %c0_23, %c0_24] : memref<3x16x8xf32, #tpu.memory_space<vmem>>, vector<3x16x8xf32>
    %34 = vector.broadcast %21 : vector<3x16x1xf32> to vector<3x16x8xf32>
    %35 = arith.mulf %34, %33 : vector<3x16x8xf32>
    %36 = arith.addf %35, %32 : vector<3x16x8xf32>
    %c0_25 = arith.constant 0 : index
    %c0_26 = arith.constant 0 : index
    %c0_27 = arith.constant 0 : index
    %37 = vector.load %arg10[%c0_25, %c0_26, %c0_27] : memref<3x16x8xf32, #tpu.memory_space<vmem>>, vector<3x16x8xf32>
    tpu.vector_store %arg10[%c0_25, %c0_26, %c0_27], %36 {strides = array<i32>} : memref<3x16x8xf32, #tpu.memory_space<vmem>>, vector<3x16x8xf32>,
    %c0_28 = arith.constant 0 : index
    %c0_29 = arith.constant 0 : index
    %c0_30 = arith.constant 0 : index
    %38 = vector.load %arg8[%c0_28, %c0_29, %c0_30] : memref<3x16x1xf32, #tpu.memory_space<vmem>>, vector<3x16x1xf32>
    tpu.vector_store %arg8[%c0_28, %c0_29, %c0_30], %19 {strides = array<i32>} : memref<3x16x1xf32, #tpu.memory_space<vmem>>, vector<3x16x1xf32>,
    %c0_i32_31 = arith.constant 0 : i32
    %39 = arith.cmpi eq, %arg3, %c0_i32_31 : i32
    %40 = arith.extui %39 : i1 to i32
    %c0_i32_32 = arith.constant 0 : i32
    %41 = arith.cmpi ne, %40, %c0_i32_32 : i32
    scf.if %41 {
      %c0_33 = arith.constant 0 : index
      %c0_34 = arith.constant 0 : index
      %c0_35 = arith.constant 0 : index
      %42 = vector.load %arg9[%c0_33, %c0_34, %c0_35] : memref<3x16x1xf32, #tpu.memory_space<vmem>>, vector<3x16x1xf32>
      %43 = tpu.reciprocal %42 {approx = true} : vector<3x16x1xf32> -> vector<3x16x1xf32>
      %c0_36 = arith.constant 0 : index
      %c0_37 = arith.constant 0 : index
      %c0_38 = arith.constant 0 : index
      %44 = vector.load %arg10[%c0_36, %c0_37, %c0_38] : memref<3x16x8xf32, #tpu.memory_space<vmem>>, vector<3x16x8xf32>
      %45 = vector.broadcast %43 : vector<3x16x1xf32> to vector<3x16x8xf32>
      %46 = arith.mulf %44, %45 : vector<3x16x8xf32>
      %47 = tpu.transpose %46, [0, 2, 1] : vector<3x16x8xf32> -> vector<3x8x16xf32>
      %48 = vector.shape_cast %47 : vector<3x8x16xf32> to vector<24x16xf32>
      %c0_39 = arith.constant 0 : index
      %c0_40 = arith.constant 0 : index
      %c0_41 = arith.constant 0 : index
      %49 = vector.load %arg7[%c0_39, %c0_40, %c0_41] : memref<1x24x16xf32, #tpu.memory_space<vmem>>, vector<1x24x16xf32>
      %50 = vector.shape_cast %49 : vector<1x24x16xf32> to vector<24x16xf32>
      %51 = vector.shape_cast %48 : vector<24x16xf32> to vector<1x24x16xf32>
      tpu.vector_store %arg7[%c0_39, %c0_40, %c0_41], %51 {strides = array<i32>} : memref<1x24x16xf32, #tpu.memory_space<vmem>>, vector<1x24x16xf32>,
    } else {
    }
    return
  }
  func.func @transform_0(%arg0: i32, %arg1: i32, %arg2: i32, %arg3: i32) -> (i32, i32, i32) {
    %c0_i32 = arith.constant 0 : i32
    return %arg0, %arg1, %arg2 : i32, i32, i32
  }
  func.func @transform_1(%arg0: i32, %arg1: i32, %arg2: i32, %arg3: i32) -> (i32, i32, i32) {
    %c1_i32 = arith.constant 1 : i32
    %0 = arith.addi %c1_i32, %arg1 : i32
    %c0_i32 = arith.constant 0 : i32
    return %arg0, %0, %arg3 : i32, i32, i32
  }
  func.func @transform_2(%arg0: i32, %arg1: i32, %arg2: i32, %arg3: i32) -> (i32, i32, i32) {
    %c2_i32 = arith.constant 2 : i32
    %0 = arith.addi %c2_i32, %arg1 : i32
    %c0_i32 = arith.constant 0 : i32
    return %arg0, %0, %arg3 : i32, i32, i32
  }
  func.func @transform_3(%arg0: i32, %arg1: i32, %arg2: i32, %arg3: i32) -> (i32, i32, i32) {
    %c0_i32 = arith.constant 0 : i32
    return %arg0, %arg1, %arg2 : i32, i32, i32
  }
}

</mosaic_0001>

<llo_original>
// kernel: tpu_custom_call.1
$region0: #{tpu_custom_call.1}
  #allocation0 [shape = 'u32[]', space=smem, size = 0x4, offset = 0x4, fixed_abs, tag = 'smem constant byte address 0x4 - core index']
  #allocation1 [shape = 'u32[72,128]{1,0:T(1,128)}', space=vmem, size = 0x9000, scoped, tag = 'internal scratch']
  #allocation2 [shape = 'f32[3,16,1]{2,1,0:T(8,128)}', space=vmem, size = 0x6000, scoped, tag = 'scratch operand']
  #allocation3 [shape = 'f32[3,16,1]{2,1,0:T(8,128)}', space=vmem, size = 0x6000, scoped, tag = 'scratch operand']
  #allocation4 [shape = 'f32[3,16,8]{2,1,0:T(8,128)}', space=vmem, size = 0x6000, scoped, tag = 'scratch operand']
  %s0 = inlined_call_operand.vmem [shape: f32[2,72,16], index: 0, kind: input, shape index: {}]
  %s1 = inlined_call_operand.vmem [shape: f32[2,72,16], index: 1, kind: input, shape index: {}]
  %s2 = inlined_call_operand.vmem [shape: f32[2,72,16], index: 2, kind: input, shape index: {}]
  %s3 = inlined_call_operand.vmem [shape: f32[2,24,16], index: 3, kind: output, shape index: {}]
  %s4 = sld [smem:[#allocation0]]
  $region53: #{tpu_custom_call.1} parent=0
    _
  %s6 = ssub.s32 1, %s4
  %s7 = scalar_select 0, %s6, %s4
  loop: start=0, step=1, limit=4
  $region2: #{tpu_custom_call.1} parent=0 // loop_pre_header
    _
  $region3: #{tpu_custom_call.1} parent=0 // loop_header
    %s9 = sphi 0, %s13
    %p10 = scmp.ge.s32.totalorder %s9, 4
    %s16 = sphi 0, %s42
    %s17 = sphi 0, %s38
    %s18 = sphi 0, %s34
    %s19 = sphi 0, %s30
    %s20 = sphi 0, %s16
    %s21 = sphi 0, %s17
    %s22 = sphi 0, %s18
    %s23 = sphi 0, %s19
    %s24 = sphi 0, %s20
    %s25 = sphi 0, %s21
    %s26 = sphi 0, %s22
    %s27 = sphi 0, %s23
    %s49 = sphi 0, %s51
    %s52 = sphi 0, %s49
    %s53 = sphi 0, %s52
    %s69 = sphi 0, %s53
    %s81 = sphi 0, %s83
    %s84 = sphi 0, %s81
    %s85 = sphi 0, %s84
    %s101 = sphi 0, %s85
    %s113 = sphi 0, %s115
    %s116 = sphi 0, %s113
    %s117 = sphi 0, %s116
    %s133 = sphi 0, %s117
    %s143 = sphi 0, %s145
    %s146 = sphi 0, %s143
    %s147 = sphi 0, %s146
    %s163 = sphi 0, %s147
  $region4: #{tpu_custom_call.1} parent=0 // loop_header_branch
    %12 = sbr.rel (%p10) target = $region8
  $region5: #{tpu_custom_call.1} parent=0 // loop_body
    %s14 = ssub.s32 %s9, 1
    %s15 = ssub.s32 %s9, 2
    %s28 = sadd.s32 1, %s19
    %p29 = scmp.ge.s32.totalorder %s28, 1
    %s30 = scalar_select %p29, 0, %s28
    %s31 = sadd.s32 1, %s18
    %s32 = scalar_select %p29, %s31, %s18
    %p33 = scmp.ge.s32.totalorder %s32, 1
    %s34 = scalar_select %p33, 0, %s32
    %s35 = sadd.s32 1, %s17
    %s36 = scalar_select %p33, %s35, %s17
    %p37 = scmp.ge.s32.totalorder %s36, 1
    %s38 = scalar_select %p37, 0, %s36
    %s39 = sadd.s32 1, %s16
    %s40 = scalar_select %p37, %s39, %s16
    %p41 = scmp.ge.s32.totalorder %s40, 2
    %s42 = scalar_select %p41, 0, %s40
    %s43 = ssub.s32 %s16, %s42
    %s44 = ssub.s32 %s17, %s38
    %s45 = sor.u32 %s43, %s44
    %s46 = ssub.s32 %s18, %s34
    %s47 = sor.u32 %s45, %s46
    %p48 = scmp.eq.s32.totalorder %s47, 0
    %s50 = sadd.s32 %s49, 1
    %s51 = scalar_select %p48, %s49, %s50
    %p54 = pneg %p48
    %p55 = scmp.eq.s32.totalorder %s9, 1
    %p56 = por %p54, %p55
    %p57 = scmp.ne.s32.totalorder %s49, %s52
    %p58 = scmp.eq.s32.totalorder %s9, 0
    %p59 = por %p57, %p58
    %p60 = scmp.ne.s32.totalorder %s49, %s52
    %p61 = scmp.eq.s32.totalorder %s14, 1
    %p62 = por %p60, %p61
    %p63 = scmp.ne.s32.totalorder %s52, %s53
    %p64 = scmp.eq.s32.totalorder %s14, 0
    %p65 = por %p63, %p64
    %p66 = scmp.ne.s32.totalorder %s52, %s53
    %p67 = scmp.eq.s32.totalorder %s15, 1
    %p68 = por %p66, %p67
    %p70 = scmp.ne.s32.totalorder %s53, %s69
    %p71 = scmp.eq.s32.totalorder %s15, 0
    %p72 = por %p70, %p71
    %s73 = sadd.s32 %s17, 1
    %s74 = sadd.s32 %s38, 1
    %s75 = ssub.s32 %s16, %s42
    %s76 = ssub.s32 %s73, %s74
    %s77 = sor.u32 %s75, %s76
    %s78 = ssub.s32 %s19, %s30
    %s79 = sor.u32 %s77, %s78
    %p80 = scmp.eq.s32.totalorder %s79, 0
    %s82 = sadd.s32 %s81, 1
    %s83 = scalar_select %p80, %s81, %s82
    %p86 = pneg %p80
    %p87 = scmp.eq.s32.totalorder %s9, 1
    %p88 = por %p86, %p87
    %p89 = scmp.ne.s32.totalorder %s81, %s84
    %p90 = scmp.eq.s32.totalorder %s9, 0
    %p91 = por %p89, %p90
    %p92 = scmp.ne.s32.totalorder %s81, %s84
    %p93 = scmp.eq.s32.totalorder %s14, 1
    %p94 = por %p92, %p93
    %p95 = scmp.ne.s32.totalorder %s84, %s85
    %p96 = scmp.eq.s32.totalorder %s14, 0
    %p97 = por %p95, %p96
    %p98 = scmp.ne.s32.totalorder %s84, %s85
    %p99 = scmp.eq.s32.totalorder %s15, 1
    %p100 = por %p98, %p99
    %p102 = scmp.ne.s32.totalorder %s85, %s101
    %p103 = scmp.eq.s32.totalorder %s15, 0
    %p104 = por %p102, %p103
    %s105 = sadd.s32 %s17, 2
    %s106 = sadd.s32 %s38, 2
    %s107 = ssub.s32 %s16, %s42
    %s108 = ssub.s32 %s105, %s106
    %s109 = sor.u32 %s107, %s108
    %s110 = ssub.s32 %s19, %s30
    %s111 = sor.u32 %s109, %s110
    %p112 = scmp.eq.s32.totalorder %s111, 0
    %s114 = sadd.s32 %s113, 1
    %s115 = scalar_select %p112, %s113, %s114
    %p118 = pneg %p112
    %p119 = scmp.eq.s32.totalorder %s9, 1
    %p120 = por %p118, %p119
    %p121 = scmp.ne.s32.totalorder %s113, %s116
    %p122 = scmp.eq.s32.totalorder %s9, 0
    %p123 = por %p121, %p122
    %p124 = scmp.ne.s32.totalorder %s113, %s116
    %p125 = scmp.eq.s32.totalorder %s14, 1
    %p126 = por %p124, %p125
    %p127 = scmp.ne.s32.totalorder %s116, %s117
    %p128 = scmp.eq.s32.totalorder %s14, 0
    %p129 = por %p127, %p128
    %p130 = scmp.ne.s32.totalorder %s116, %s117
    %p131 = scmp.eq.s32.totalorder %s15, 1
    %p132 = por %p130, %p131
    %p134 = scmp.ne.s32.totalorder %s117, %s133
    %p135 = scmp.eq.s32.totalorder %s15, 0
    %p136 = por %p134, %p135
    %s137 = ssub.s32 %s16, %s42
    %s138 = ssub.s32 %s17, %s38
    %s139 = sor.u32 %s137, %s138
    %s140 = ssub.s32 %s18, %s34
    %s141 = sor.u32 %s139, %s140
    %p142 = scmp.eq.s32.totalorder %s141, 0
    %s144 = sadd.s32 %s143, 1
    %s145 = scalar_select %p142, %s143, %s144
    %p148 = pneg %p142
    %p149 = scmp.eq.s32.totalorder %s9, 1
    %p150 = por %p148, %p149
    %p151 = scmp.ne.s32.totalorder %s143, %s146
    %p152 = scmp.eq.s32.totalorder %s9, 0
    %p153 = por %p151, %p152
    %p154 = scmp.ne.s32.totalorder %s143, %s146
    %p155 = scmp.eq.s32.totalorder %s14, 1
    %p156 = por %p154, %p155
    %p157 = scmp.ne.s32.totalorder %s146, %s147
    %p158 = scmp.eq.s32.totalorder %s14, 0
    %p159 = por %p157, %p158
    %p160 = scmp.ne.s32.totalorder %s146, %s147
    %p161 = scmp.eq.s32.totalorder %s15, 1
    %p162 = por %p160, %p161
    %p164 = scmp.ne.s32.totalorder %s147, %s163
    %p165 = scmp.eq.s32.totalorder %s15, 0
    %p166 = por %p164, %p165
    %p167 = scmp.le.s32.totalorder 1, %s9
    %p168 = scmp.lt.s32.totalorder %s9, 3
    %p169 = pnand %p167, %p168
    %p170 = pneg %p169
    // Predicated region
    $region9: #{tpu_custom_call.1} parent=5 // pred_check
      _
    $region10: #{tpu_custom_call.1} parent=5 // pred_check_branch
      %172 = sbr.rel (%p169) target = $region12
    $region11: #{tpu_custom_call.1} parent=5 // pred_region
      %s173 = ssub.s32 %s9, 1
    $region12: #{tpu_custom_call.1} parent=5 // pred_fallthru
      _
    %p174 = scmp.lt.s32.totalorder %s9, 2
    // Predicated region
    $region13: #{tpu_custom_call.1} parent=5 // pred_check
      %p175 = pneg %p174
    $region14: #{tpu_custom_call.1} parent=5 // pred_check_branch
      %177 = sbr.rel (%p175) target = $region16
    $region15: #{tpu_custom_call.1} parent=5 // pred_region
      // Predicated region
      $region17: #{tpu_custom_call.1} parent=15 // pred_check
        %p178 = pneg %p59
      $region18: #{tpu_custom_call.1} parent=15 // pred_check_branch
        %180 = sbr.rel (%p178) target = $region20
      $region19: #{tpu_custom_call.1} parent=15 // pred_region
        %s181 = smul.u32 3, %s17
        %p182 = scmp.lt.s32.totalorder %s16, 1
        %s183 = scalar_select %p182, %s16, 1
        %p184 = scmp.lt.s32.totalorder %s181, 8
        %s185 = scalar_select %p184, %s181, 8
        %p186 = scmp.lt.s32.totalorder %s18, 0
        %s187 = scalar_select %p186, %s18, 0
        %s188 = sadd.s32 %s187, %s185
        %s189 = smul.addr %s183, 9
        %s190 = sadd.s32 %s188, %s189
        %s191 = smul.addr %s190, 8
        %s192 = scalar_lea.vmem %s0, %s191
        %s193 = smul.u32 3, %s17
      $region20: #{tpu_custom_call.1} parent=15 // pred_fallthru
        _
      // Predicated region
      $region21: #{tpu_custom_call.1} parent=15 // pred_check
        %p194 = pneg %p91
      $region22: #{tpu_custom_call.1} parent=15 // pred_check_branch
        %196 = sbr.rel (%p194) target = $region24
      $region23: #{tpu_custom_call.1} parent=15 // pred_region
        %s197 = sadd.s32 %s17, 1
        %s198 = smul.u32 3, %s197
        %p199 = scmp.lt.s32.totalorder %s16, 1
        %s200 = scalar_select %p199, %s16, 1
        %p201 = scmp.lt.s32.totalorder %s198, 8
        %s202 = scalar_select %p201, %s198, 8
        %p203 = scmp.lt.s32.totalorder %s19, 0
        %s204 = scalar_select %p203, %s19, 0
        %s205 = sadd.s32 %s204, %s202
        %s206 = smul.addr %s200, 9
        %s207 = sadd.s32 %s205, %s206
        %s208 = smul.addr %s207, 8
        %s209 = scalar_lea.vmem %s1, %s208
        %s210 = sadd.s32 %s17, 1
        %s211 = smul.u32 3, %s210
      $region24: #{tpu_custom_call.1} parent=15 // pred_fallthru
        _
      // Predicated region
      $region25: #{tpu_custom_call.1} parent=15 // pred_check
        %p212 = pneg %p123
      $region26: #{tpu_custom_call.1} parent=15 // pred_check_branch
        %214 = sbr.rel (%p212) target = $region28
      $region27: #{tpu_custom_call.1} parent=15 // pred_region
        %s215 = sadd.s32 %s17, 2
        %s216 = smul.u32 3, %s215
        %p217 = scmp.lt.s32.totalorder %s16, 1
        %s218 = scalar_select %p217, %s16, 1
        %p219 = scmp.lt.s32.totalorder %s216, 8
        %s220 = scalar_select %p219, %s216, 8
        %p221 = scmp.lt.s32.totalorder %s19, 0
        %s222 = scalar_select %p221, %s19, 0
        %s223 = sadd.s32 %s222, %s220
        %s224 = smul.addr %s218, 9
        %s225 = sadd.s32 %s223, %s224
        %s226 = smul.addr %s225, 8
        %s227 = scalar_lea.vmem %s2, %s226
        %s228 = sadd.s32 %s17, 2
        %s229 = smul.u32 3, %s228
      $region28: #{tpu_custom_call.1} parent=15 // pred_fallthru
        _
    $region16: #{tpu_custom_call.1} parent=5 // pred_fallthru
      _
    %p230 = scmp.le.s32.totalorder 1, %s9
    %p231 = scmp.lt.s32.totalorder %s9, 3
    %p232 = pnand %p230, %p231
    %p233 = pneg %p232
    // Predicated region
    $region29: #{tpu_custom_call.1} parent=5 // pred_check
      _
    $region30: #{tpu_custom_call.1} parent=5 // pred_check_branch
      %235 = sbr.rel (%p232) target = $region32
    $region31: #{tpu_custom_call.1} parent=5 // pred_region
      %s236 = ssub.s32 %s9, 1
      %s237 = smul.u32 3, %s21
      %p238 = scmp.lt.s32.totalorder %s20, 1
      %s239 = scalar_select %p238, %s20, 1
      %p240 = scmp.lt.s32.totalorder %s237, 8
      %s241 = scalar_select %p240, %s237, 8
      %p242 = scmp.lt.s32.totalorder %s22, 0
      %s243 = scalar_select %p242, %s22, 0
      %s244 = sadd.s32 %s243, %s241
      %s245 = smul.addr %s239, 9
      %s246 = sadd.s32 %s244, %s245
      %s247 = smul.addr %s246, 8
      %s248 = scalar_lea.vmem %s0, %s247
      %p249 = pneg %p65
      %p250 = pneg %p62
      %s251 = sadd.s32 %s21, 1
      %s252 = smul.u32 3, %s251
      %p253 = scmp.lt.s32.totalorder %s20, 1
      %s254 = scalar_select %p253, %s20, 1
      %p255 = scmp.lt.s32.totalorder %s252, 8
      %s256 = scalar_select %p255, %s252, 8
      %p257 = scmp.lt.s32.totalorder %s23, 0
      %s258 = scalar_select %p257, %s23, 0
      %s259 = sadd.s32 %s258, %s256
      %s260 = smul.addr %s254, 9
      %s261 = sadd.s32 %s259, %s260
      %s262 = smul.addr %s261, 8
      %s263 = scalar_lea.vmem %s1, %s262
      %p264 = pneg %p97
      %p265 = pneg %p94
      %s266 = sadd.s32 %s21, 2
      %s267 = smul.u32 3, %s266
      %p268 = scmp.lt.s32.totalorder %s20, 1
      %s269 = scalar_select %p268, %s20, 1
      %p270 = scmp.lt.s32.totalorder %s267, 8
      %s271 = scalar_select %p270, %s267, 8
      %p272 = scmp.lt.s32.totalorder %s23, 0
      %s273 = scalar_select %p272, %s23, 0
      %s274 = sadd.s32 %s273, %s271
      %s275 = smul.addr %s269, 9
      %s276 = sadd.s32 %s274, %s275
      %s277 = smul.addr %s276, 8
      %s278 = scalar_lea.vmem %s2, %s277
      %p279 = pneg %p129
      %p280 = pneg %p126
      %p281 = pneg %p159
      %p282 = pneg %p156
      %s283 = smul.u32 3, %s21
      %p284 = scmp.lt.s32.totalorder %s20, 1
      %s285 = scalar_select %p284, %s20, 1
      %p286 = scmp.lt.s32.totalorder %s283, 2
      %s287 = scalar_select %p286, %s283, 2
      %p288 = scmp.lt.s32.totalorder %s22, 0
      %s289 = scalar_select %p288, %s22, 0
      %s290 = sadd.s32 %s289, %s287
      %s291 = smul.addr %s285, 3
      %s292 = sadd.s32 %s290, %s291
      %s293 = smul.addr %s292, 8
      %s294 = scalar_lea.vmem %s3, %s293
      %s295 = smul.u32 3, %s21
      %p296 = scmp.lt.s32.totalorder %s20, 1
      %s297 = scalar_select %p296, %s20, 1
      %p298 = scmp.lt.s32.totalorder %s295, 8
      %s299 = scalar_select %p298, %s295, 8
      %p300 = scmp.lt.s32.totalorder %s22, 0
      %s301 = scalar_select %p300, %s22, 0
      %s302 = sadd.s32 %s301, %s299
      %s303 = smul.addr %s297, 9
      %s304 = sadd.s32 %s302, %s303
      %s305 = smul.addr %s304, 8
      %s306 = scalar_lea.vmem %s0, %s305
      %s307 = smul.u32 3, %s21
      %s308 = sadd.s32 %s21, 1
      %s309 = smul.u32 3, %s308
      %p310 = scmp.lt.s32.totalorder %s20, 1
      %s311 = scalar_select %p310, %s20, 1
      %p312 = scmp.lt.s32.totalorder %s309, 8
      %s313 = scalar_select %p312, %s309, 8
      %p314 = scmp.lt.s32.totalorder %s23, 0
      %s315 = scalar_select %p314, %s23, 0
      %s316 = sadd.s32 %s315, %s313
      %s317 = smul.addr %s311, 9
      %s318 = sadd.s32 %s316, %s317
      %s319 = smul.addr %s318, 8
      %s320 = scalar_lea.vmem %s1, %s319
      %s321 = sadd.s32 %s21, 1
      %s322 = smul.u32 3, %s321
      %s323 = sadd.s32 %s21, 2
      %s324 = smul.u32 3, %s323
      %p325 = scmp.lt.s32.totalorder %s20, 1
      %s326 = scalar_select %p325, %s20, 1
      %p327 = scmp.lt.s32.totalorder %s324, 8
      %s328 = scalar_select %p327, %s324, 8
      %p329 = scmp.lt.s32.totalorder %s23, 0
      %s330 = scalar_select %p329, %s23, 0
      %s331 = sadd.s32 %s330, %s328
      %s332 = smul.addr %s326, 9
      %s333 = sadd.s32 %s331, %s332
      %s334 = smul.addr %s333, 8
      %s335 = scalar_lea.vmem %s2, %s334
      %s336 = sadd.s32 %s21, 2
      %s337 = smul.u32 3, %s336
      %s338 = smul.u32 3, %s21
      %p339 = scmp.lt.s32.totalorder %s20, 1
      %s340 = scalar_select %p339, %s20, 1
      %p341 = scmp.lt.s32.totalorder %s338, 2
      %s342 = scalar_select %p341, %s338, 2
      %p343 = scmp.lt.s32.totalorder %s22, 0
      %s344 = scalar_select %p343, %s22, 0
      %s345 = sadd.s32 %s344, %s342
      %s346 = smul.addr %s340, 3
      %s347 = sadd.s32 %s345, %s346
      %s348 = smul.addr %s347, 8
      %s349 = scalar_lea.vmem %s3, %s348
      %s350 = smul.u32 3, %s21
      %p351 = scmp.eq.s32.totalorder %s23, 0
      // Predicated region
      $region33: #{tpu_custom_call.1} parent=31 // pred_check
        %p352 = pneg %p351
      $region34: #{tpu_custom_call.1} parent=31 // pred_check_branch
        %354 = sbr.rel (%p352) target = $region36
      $region35: #{tpu_custom_call.1} parent=31 // pred_region
        %vm355 = vcmask 7168
        %356 = vst.msk [vmem:[#allocation2] sm:$0xff] %vm355, -1e+30
        %357 = vst.msk [vmem:[#allocation2 + $0x8] sm:$0xff] %vm355, -1e+30
        %358 = vst.msk [vmem:[#allocation2 + $0x10] sm:$0xff] %vm355, -1e+30
        %359 = vst.msk [vmem:[#allocation2 + $0x18] sm:$0xff] %vm355, -1e+30
        %360 = vst.msk [vmem:[#allocation2 + $0x20] sm:$0xff] %vm355, -1e+30
        %361 = vst.msk [vmem:[#allocation2 + $0x28] sm:$0xff] %vm355, -1e+30
        %362 = vst.msk [vmem:[#allocation3] sm:$0xff] %vm355, 0.0
        %363 = vst.msk [vmem:[#allocation3 + $0x8] sm:$0xff] %vm355, 0.0
        %364 = vst.msk [vmem:[#allocation3 + $0x10] sm:$0xff] %vm355, 0.0
        %365 = vst.msk [vmem:[#allocation3 + $0x18] sm:$0xff] %vm355, 0.0
        %366 = vst.msk [vmem:[#allocation3 + $0x20] sm:$0xff] %vm355, 0.0
        %367 = vst.msk [vmem:[#allocation3 + $0x28] sm:$0xff] %vm355, 0.0
        %vm368 = vcmask 64512
        %369 = vst.msk [vmem:[#allocation4] sm:$0xff] %vm368, 0.0
        %370 = vst.msk [vmem:[#allocation4 + $0x8] sm:$0xff] %vm368, 0.0
        %371 = vst.msk [vmem:[#allocation4 + $0x10] sm:$0xff] %vm368, 0.0
        %372 = vst.msk [vmem:[#allocation4 + $0x18] sm:$0xff] %vm368, 0.0
        %373 = vst.msk [vmem:[#allocation4 + $0x20] sm:$0xff] %vm368, 0.0
        %374 = vst.msk [vmem:[#allocation4 + $0x28] sm:$0xff] %vm368, 0.0
      $region36: #{tpu_custom_call.1} parent=31 // pred_fallthru
        _
      %v375 = vld [vmem:[%s306] sm:$0xff]
      %v376 = vld [vmem:[%s306 + $0x8] sm:$0xff]
      %v377 = vld [vmem:[%s306 + $0x10] sm:$0xff]
      %v378 = vld [vmem:[%s320] sm:$0xff]
      %v379 = vld [vmem:[%s320 + $0x8] sm:$0xff]
      %v380 = vld [vmem:[%s320 + $0x10] sm:$0xff]
      %v381 = vld [vmem:[%s335] sm:$0xff]
      %v382 = vld [vmem:[%s335 + $0x8] sm:$0xff]
      %v383 = vld [vmem:[%s335 + $0x10] sm:$0xff]
      %384 = vxpose.xlu0.b32.start [1/16] %v375, 128
      %385 = vxpose.xlu0.b32.cont [2/16] 0.0, 128
      %386 = vxpose.xlu0.b32.cont [3/16] 0.0, 128
      %387 = vxpose.xlu0.b32.cont [4/16] 0.0, 128
      %388 = vxpose.xlu0.b32.cont [5/16] 0.0, 128
      %389 = vxpose.xlu0.b32.cont [6/16] 0.0, 128
      %390 = vxpose.xlu0.b32.cont [7/16] 0.0, 128
      %391 = vxpose.xlu0.b32.cont [8/16] 0.0, 128
      %392 = vxpose.xlu0.b32.cont [9/16] 0.0, 128
      %393 = vxpose.xlu0.b32.cont [10/16] 0.0, 128
      %394 = vxpose.xlu0.b32.cont [11/16] 0.0, 128
      %395 = vxpose.xlu0.b32.cont [12/16] 0.0, 128
      %396 = vxpose.xlu0.b32.cont [13/16] 0.0, 128
      %397 = vxpose.xlu0.b32.cont [14/16] 0.0, 128
      %398 = vxpose.xlu0.b32.cont [15/16] 0.0, 128
      %399 = vxpose.xlu0.b32.end [16/16] 0.0, 128
      %v400 = vpop.trf.xlu0
      %v401 = vpop.trf.xlu0
      %v402 = vpop.trf.xlu0
      %v403 = vpop.trf.xlu0
      %v404 = vpop.trf.xlu0
      %v405 = vpop.trf.xlu0
      %v406 = vpop.trf.xlu0
      %v407 = vpop.trf.xlu0
      %v408 = vpop.trf.xlu0
      %v409 = vpop.trf.xlu0
      %v410 = vpop.trf.xlu0
      %v411 = vpop.trf.xlu0
      %v412 = vpop.trf.xlu0
      %v413 = vpop.trf.xlu0
      %v414 = vpop.trf.xlu0
      %v415 = vpop.trf.xlu0
      %416 = vxpose.xlu0.b32.start [1/16] %v376, 128
      %417 = vxpose.xlu0.b32.cont [2/16] 0.0, 128
      %418 = vxpose.xlu0.b32.cont [3/16] 0.0, 128
      %419 = vxpose.xlu0.b32.cont [4/16] 0.0, 128
      %420 = vxpose.xlu0.b32.cont [5/16] 0.0, 128
      %421 = vxpose.xlu0.b32.cont [6/16] 0.0, 128
      %422 = vxpose.xlu0.b32.cont [7/16] 0.0, 128
      %423 = vxpose.xlu0.b32.cont [8/16] 0.0, 128
      %424 = vxpose.xlu0.b32.cont [9/16] 0.0, 128
      %425 = vxpose.xlu0.b32.cont [10/16] 0.0, 128
      %426 = vxpose.xlu0.b32.cont [11/16] 0.0, 128
      %427 = vxpose.xlu0.b32.cont [12/16] 0.0, 128
      %428 = vxpose.xlu0.b32.cont [13/16] 0.0, 128
      %429 = vxpose.xlu0.b32.cont [14/16] 0.0, 128
      %430 = vxpose.xlu0.b32.cont [15/16] 0.0, 128
      %431 = vxpose.xlu0.b32.end [16/16] 0.0, 128
      %v432 = vpop.trf.xlu0
      %v433 = vpop.trf.xlu0
      %v434 = vpop.trf.xlu0
      %v435 = vpop.trf.xlu0
      %v436 = vpop.trf.xlu0
      %v437 = vpop.trf.xlu0
      %v438 = vpop.trf.xlu0
      %v439 = vpop.trf.xlu0
      %v440 = vpop.trf.xlu0
      %v441 = vpop.trf.xlu0
      %v442 = vpop.trf.xlu0
      %v443 = vpop.trf.xlu0
      %v444 = vpop.trf.xlu0
      %v445 = vpop.trf.xlu0
      %v446 = vpop.trf.xlu0
      %v447 = vpop.trf.xlu0
      %448 = vxpose.xlu0.b32.start [1/16] %v377, 128
      %449 = vxpose.xlu0.b32.cont [2/16] 0.0, 128
      %450 = vxpose.xlu0.b32.cont [3/16] 0.0, 128
      %451 = vxpose.xlu0.b32.cont [4/16] 0.0, 128
      %452 = vxpose.xlu0.b32.cont [5/16] 0.0, 128
      %453 = vxpose.xlu0.b32.cont [6/16] 0.0, 128
      %454 = vxpose.xlu0.b32.cont [7/16] 0.0, 128
      %455 = vxpose.xlu0.b32.cont [8/16] 0.0, 128
      %456 = vxpose.xlu0.b32.cont [9/16] 0.0, 128
      %457 = vxpose.xlu0.b32.cont [10/16] 0.0, 128
      %458 = vxpose.xlu0.b32.cont [11/16] 0.0, 128
      %459 = vxpose.xlu0.b32.cont [12/16] 0.0, 128
      %460 = vxpose.xlu0.b32.cont [13/16] 0.0, 128
      %461 = vxpose.xlu0.b32.cont [14/16] 0.0, 128
      %462 = vxpose.xlu0.b32.cont [15/16] 0.0, 128
      %463 = vxpose.xlu0.b32.end [16/16] 0.0, 128
      %v464 = vpop.trf.xlu0
      %v465 = vpop.trf.xlu0
      %v466 = vpop.trf.xlu0
      %v467 = vpop.trf.xlu0
      %v468 = vpop.trf.xlu0
      %v469 = vpop.trf.xlu0
      %v470 = vpop.trf.xlu0
      %v471 = vpop.trf.xlu0
      %v472 = vpop.trf.xlu0
      %v473 = vpop.trf.xlu0
      %v474 = vpop.trf.xlu0
      %v475 = vpop.trf.xlu0
      %v476 = vpop.trf.xlu0
      %v477 = vpop.trf.xlu0
      %v478 = vpop.trf.xlu0
      %v479 = vpop.trf.xlu0
      %vm480 = vcmask 64512
      %v482 = vsel %vm480, %v400, 0
      %v485 = vsel %vm480, %v401, 0
      %487 = vmatpush.msra.mxu0 0.0
      %488 = vmatpush.msra.mxu0 0.0
      %489 = vmatpush.msra.mxu0 0.0
      %490 = vmatpush.msra.mxu0 0.0
      %491 = vmatpush.msra.mxu0 0.0
      %492 = vmatpush.msra.mxu0 0.0
      %493 = vmatpush.msra.mxu0 0.0
      %494 = vmatpush.msra.mxu0 0.0
      %495 = vmatpush.msra.mxu0 0.0
      %496 = vmatpush.msra.mxu0 0.0
      %497 = vmatpush.msra.mxu0 0.0
      %498 = vmatpush.msra.mxu0 0.0
      %499 = vmatpush.msra.mxu0 0.0
      %500 = vmatpush.msra.mxu0 0.0
      %501 = vmatpush.msra.mxu0 0.0
      %502 = vmatpush.msra.mxu0 %v378
      %503 = vmatmul.f32.gmra.mxu0 %v482
      %v504 = vpop.f32.mrf.mxu0
      %v505 = vadd.f32 0.0, %v504
      %506 = vmatmul.f32.gmra.mxu0 %v485
      %v507 = vpop.f32.mrf.mxu0
      %v508 = vadd.f32 0.0, %v507
      %509 = vdwg.mxu0
      %v511 = vsel %vm480, %v432, 0
      %v514 = vsel %vm480, %v433, 0
      %516 = vmatpush.msra.mxu0 0.0
      %517 = vmatpush.msra.mxu0 0.0
      %518 = vmatpush.msra.mxu0 0.0
      %519 = vmatpush.msra.mxu0 0.0
      %520 = vmatpush.msra.mxu0 0.0
      %521 = vmatpush.msra.mxu0 0.0
      %522 = vmatpush.msra.mxu0 0.0
      %523 = vmatpush.msra.mxu0 0.0
      %524 = vmatpush.msra.mxu0 0.0
      %525 = vmatpush.msra.mxu0 0.0
      %526 = vmatpush.msra.mxu0 0.0
      %527 = vmatpush.msra.mxu0 0.0
      %528 = vmatpush.msra.mxu0 0.0
      %529 = vmatpush.msra.mxu0 0.0
      %530 = vmatpush.msra.mxu0 0.0
      %531 = vmatpush.msra.mxu0 %v379
      %532 = vmatmul.f32.gmra.mxu0 %v511
      %v533 = vpop.f32.mrf.mxu0
      %v534 = vadd.f32 0.0, %v533
      %535 = vmatmul.f32.gmra.mxu0 %v514
      %v536 = vpop.f32.mrf.mxu0
      %v537 = vadd.f32 0.0, %v536
      %538 = vdwg.mxu0
      %v540 = vsel %vm480, %v464, 0
      %v543 = vsel %vm480, %v465, 0
      %545 = vmatpush.msra.mxu0 0.0
      %546 = vmatpush.msra.mxu0 0.0
      %547 = vmatpush.msra.mxu0 0.0
      %548 = vmatpush.msra.mxu0 0.0
      %549 = vmatpush.msra.mxu0 0.0
      %550 = vmatpush.msra.mxu0 0.0
      %551 = vmatpush.msra.mxu0 0.0
      %552 = vmatpush.msra.mxu0 0.0
      %553 = vmatpush.msra.mxu0 0.0
      %554 = vmatpush.msra.mxu0 0.0
      %555 = vmatpush.msra.mxu0 0.0
      %556 = vmatpush.msra.mxu0 0.0
      %557 = vmatpush.msra.mxu0 0.0
      %558 = vmatpush.msra.mxu0 0.0
      %559 = vmatpush.msra.mxu0 0.0
      %560 = vmatpush.msra.mxu0 %v380
      %561 = vmatmul.f32.gmra.mxu0 %v540
      %v562 = vpop.f32.mrf.mxu0
      %v563 = vadd.f32 0.0, %v562
      %564 = vmatmul.f32.gmra.mxu0 %v543
      %v565 = vpop.f32.mrf.mxu0
      %v566 = vadd.f32 0.0, %v565
      %567 = vdwg.mxu0
      %v568 = vmul.f32 %v505, 0.35355338
      %v569 = vmul.f32 %v508, 0.35355338
      %v570 = vmul.f32 %v534, 0.35355338
      %v571 = vmul.f32 %v537, 0.35355338
      %v572 = vmul.f32 %v563, 0.35355338
      %v573 = vmul.f32 %v566, 0.35355338
      %v574 = vld [vmem:[#allocation2] sm:$0xff]
      %v575 = vld [vmem:[#allocation2 + $0x8] sm:$0xff]
      %v576 = vld [vmem:[#allocation2 + $0x10] sm:$0xff]
      %v577 = vld [vmem:[#allocation2 + $0x18] sm:$0xff]
      %v578 = vld [vmem:[#allocation2 + $0x20] sm:$0xff]
      %v579 = vld [vmem:[#allocation2 + $0x28] sm:$0xff]
      %vm580 = vcmask 130048
      %v581 = vsel %vm580, %v568, -inf
      %582 = vmax.xlane.f32.xlu0 %v581
      %v583 = vpop.xlane.xlu0 %582
      %v584 = vsel %vm580, %v569, -inf
      %585 = vmax.xlane.f32.xlu0 %v584
      %v586 = vpop.xlane.xlu0 %585
      %v587 = vsel %vm580, %v570, -inf
      %588 = vmax.xlane.f32.xlu0 %v587
      %v589 = vpop.xlane.xlu0 %588
      %v590 = vsel %vm580, %v571, -inf
      %591 = vmax.xlane.f32.xlu0 %v590
      %v592 = vpop.xlane.xlu0 %591
      %v593 = vsel %vm580, %v572, -inf
      %594 = vmax.xlane.f32.xlu0 %v593
      %v595 = vpop.xlane.xlu0 %594
      %v596 = vsel %vm580, %v573, -inf
      %597 = vmax.xlane.f32.xlu0 %v596
      %v598 = vpop.xlane.xlu0 %597
      %v599 = vmax.f32 %v574, %v583
      %v600 = vmax.f32 %v575, %v586
      %v601 = vmax.f32 %v576, %v589
      %v602 = vmax.f32 %v577, %v592
      %v603 = vmax.f32 %v578, %v595
      %v604 = vmax.f32 %v579, %v598
      %v605 = vsub.f32 %v574, %v599
      %v606 = vsub.f32 %v575, %v600
      %v607 = vsub.f32 %v576, %v601
      %v608 = vsub.f32 %v577, %v602
      %v609 = vsub.f32 %v578, %v603
      %v610 = vsub.f32 %v579, %v604
      %v611 = vmul.f32 %v605, 1.442695
      %v612 = vpow.pop %v611
      %v613 = vmul.f32 %v606, 1.442695
      %v614 = vpow.pop %v613
      %v615 = vmul.f32 %v607, 1.442695
      %v616 = vpow.pop %v615
      %v617 = vmul.f32 %v608, 1.442695
      %v618 = vpow.pop %v617
      %v619 = vmul.f32 %v609, 1.442695
      %v620 = vpow.pop %v619
      %v621 = vmul.f32 %v610, 1.442695
      %v622 = vpow.pop %v621
      %624 = vset.pattern.permute.xlu0 0
      %625 = vperm.xlu0 %624, %v599
      %v626 = vpop.permute.xlu0 %625
      %629 = vset.pattern.permute.xlu0 0
      %630 = vperm.xlu0 %629, %v600
      %v631 = vpop.permute.xlu0 %630
      %634 = vset.pattern.permute.xlu0 0
      %635 = vperm.xlu0 %634, %v601
      %v636 = vpop.permute.xlu0 %635
      %639 = vset.pattern.permute.xlu0 0
      %640 = vperm.xlu0 %639, %v602
      %v641 = vpop.permute.xlu0 %640
      %644 = vset.pattern.permute.xlu0 0
      %645 = vperm.xlu0 %644, %v603
      %v646 = vpop.permute.xlu0 %645
      %649 = vset.pattern.permute.xlu0 0
      %650 = vperm.xlu0 %649, %v604
      %v651 = vpop.permute.xlu0 %650
      %v653 = vsub.f32 %v568, %v626
      %v654 = vsub.f32 %v569, %v631
      %v655 = vsub.f32 %v570, %v636
      %v656 = vsub.f32 %v571, %v641
      %v657 = vsub.f32 %v572, %v646
      %v658 = vsub.f32 %v573, %v651
      %v659 = vmul.f32 %v653, 1.442695
      %v660 = vpow.pop %v659
      %v661 = vmul.f32 %v654, 1.442695
      %v662 = vpow.pop %v661
      %v663 = vmul.f32 %v655, 1.442695
      %v664 = vpow.pop %v663
      %v665 = vmul.f32 %v656, 1.442695
      %v666 = vpow.pop %v665
      %v667 = vmul.f32 %v657, 1.442695
      %v668 = vpow.pop %v667
      %v669 = vmul.f32 %v658, 1.442695
      %v670 = vpow.pop %v669
      %v671 = vld [vmem:[#allocation3] sm:$0xff]
      %v672 = vld [vmem:[#allocation3 + $0x8] sm:$0xff]
      %v673 = vld [vmem:[#allocation3 + $0x10] sm:$0xff]
      %v674 = vld [vmem:[#allocation3 + $0x18] sm:$0xff]
      %v675 = vld [vmem:[#allocation3 + $0x20] sm:$0xff]
      %v676 = vld [vmem:[#allocation3 + $0x28] sm:$0xff]
      %v677 = vmul.f32 %v612, %v671
      %v678 = vmul.f32 %v614, %v672
      %v679 = vmul.f32 %v616, %v673
      %v680 = vmul.f32 %v618, %v674
      %v681 = vmul.f32 %v620, %v675
      %v682 = vmul.f32 %v622, %v676
      %v683 = vsel %vm580, %v660, 0.0
      %684 = vadd.xlane.f32.xlu0 %v683
      %v685 = vpop.xlane.xlu0 %684
      %v686 = vsel %vm580, %v662, 0.0
      %687 = vadd.xlane.f32.xlu0 %v686
      %v688 = vpop.xlane.xlu0 %687
      %v689 = vsel %vm580, %v664, 0.0
      %690 = vadd.xlane.f32.xlu0 %v689
      %v691 = vpop.xlane.xlu0 %690
      %v692 = vsel %vm580, %v666, 0.0
      %693 = vadd.xlane.f32.xlu0 %v692
      %v694 = vpop.xlane.xlu0 %693
      %v695 = vsel %vm580, %v668, 0.0
      %696 = vadd.xlane.f32.xlu0 %v695
      %v697 = vpop.xlane.xlu0 %696
      %v698 = vsel %vm580, %v670, 0.0
      %699 = vadd.xlane.f32.xlu0 %v698
      %v700 = vpop.xlane.xlu0 %699
      %v701 = vadd.f32 %v677, %v685
      %v702 = vadd.f32 %v678, %v688
      %v703 = vadd.f32 %v679, %v691
      %v704 = vadd.f32 %v680, %v694
      %v705 = vadd.f32 %v681, %v697
      %v706 = vadd.f32 %v682, %v700
      %vm707 = vcmask 7168
      %708 = vst.msk [vmem:[#allocation3] sm:$0xff] %vm707, %v701
      %709 = vst.msk [vmem:[#allocation3 + $0x8] sm:$0xff] %vm707, %v702
      %710 = vst.msk [vmem:[#allocation3 + $0x10] sm:$0xff] %vm707, %v703
      %711 = vst.msk [vmem:[#allocation3 + $0x18] sm:$0xff] %vm707, %v704
      %712 = vst.msk [vmem:[#allocation3 + $0x20] sm:$0xff] %vm707, %v705
      %713 = vst.msk [vmem:[#allocation3 + $0x28] sm:$0xff] %vm707, %v706
      %v715 = vsel %vm580, %v660, 0
      %v718 = vsel %vm580, %v662, 0
      %v721 = vsel %vm580, %v381, 0
      %723 = vmatpush.xpose.msra.mxu0 0.0
      %724 = vmatpush.xpose.msra.mxu0 0.0
      %725 = vmatpush.xpose.msra.mxu0 0.0
      %726 = vmatpush.xpose.msra.mxu0 0.0
      %727 = vmatpush.xpose.msra.mxu0 0.0
      %728 = vmatpush.xpose.msra.mxu0 0.0
      %729 = vmatpush.xpose.msra.mxu0 0.0
      %730 = vmatpush.xpose.msra.mxu0 0.0
      %731 = vmatpush.xpose.msra.mxu0 0.0
      %732 = vmatpush.xpose.msra.mxu0 0.0
      %733 = vmatpush.xpose.msra.mxu0 0.0
      %734 = vmatpush.xpose.msra.mxu0 0.0
      %735 = vmatpush.xpose.msra.mxu0 0.0
      %736 = vmatpush.xpose.msra.mxu0 0.0
      %737 = vmatpush.xpose.msra.mxu0 0.0
      %738 = vmatpush.xpose.msra.mxu0 %v721
      %739 = vmatmul.f32.gmra.mxu0 %v715
      %v740 = vpop.f32.mrf.mxu0
      %v741 = vadd.f32 0.0, %v740
      %742 = vmatmul.f32.gmra.mxu0 %v718
      %v743 = vpop.f32.mrf.mxu0
      %v744 = vadd.f32 0.0, %v743
      %745 = vdwg.mxu0
      %v747 = vsel %vm580, %v664, 0
      %v750 = vsel %vm580, %v666, 0
      %v753 = vsel %vm580, %v382, 0
      %755 = vmatpush.xpose.msra.mxu0 0.0
      %756 = vmatpush.xpose.msra.mxu0 0.0
      %757 = vmatpush.xpose.msra.mxu0 0.0
      %758 = vmatpush.xpose.msra.mxu0 0.0
      %759 = vmatpush.xpose.msra.mxu0 0.0
      %760 = vmatpush.xpose.msra.mxu0 0.0
      %761 = vmatpush.xpose.msra.mxu0 0.0
      %762 = vmatpush.xpose.msra.mxu0 0.0
      %763 = vmatpush.xpose.msra.mxu0 0.0
      %764 = vmatpush.xpose.msra.mxu0 0.0
      %765 = vmatpush.xpose.msra.mxu0 0.0
      %766 = vmatpush.xpose.msra.mxu0 0.0
      %767 = vmatpush.xpose.msra.mxu0 0.0
      %768 = vmatpush.xpose.msra.mxu0 0.0
      %769 = vmatpush.xpose.msra.mxu0 0.0
      %770 = vmatpush.xpose.msra.mxu0 %v753
      %771 = vmatmul.f32.gmra.mxu0 %v747
      %v772 = vpop.f32.mrf.mxu0
      %v773 = vadd.f32 0.0, %v772
      %774 = vmatmul.f32.gmra.mxu0 %v750
      %v775 = vpop.f32.mrf.mxu0
      %v776 = vadd.f32 0.0, %v775
      %777 = vdwg.mxu0
      %v779 = vsel %vm580, %v668, 0
      %v782 = vsel %vm580, %v670, 0
      %v785 = vsel %vm580, %v383, 0
      %787 = vmatpush.xpose.msra.mxu0 0.0
      %788 = vmatpush.xpose.msra.mxu0 0.0
      %789 = vmatpush.xpose.msra.mxu0 0.0
      %790 = vmatpush.xpose.msra.mxu0 0.0
      %791 = vmatpush.xpose.msra.mxu0 0.0
      %792 = vmatpush.xpose.msra.mxu0 0.0
      %793 = vmatpush.xpose.msra.mxu0 0.0
      %794 = vmatpush.xpose.msra.mxu0 0.0
      %795 = vmatpush.xpose.msra.mxu0 0.0
      %796 = vmatpush.xpose.msra.mxu0 0.0
      %797 = vmatpush.xpose.msra.mxu0 0.0
      %798 = vmatpush.xpose.msra.mxu0 0.0
      %799 = vmatpush.xpose.msra.mxu0 0.0
      %800 = vmatpush.xpose.msra.mxu0 0.0
      %801 = vmatpush.xpose.msra.mxu0 0.0
      %802 = vmatpush.xpose.msra.mxu0 %v785
      %803 = vmatmul.f32.gmra.mxu0 %v779
      %v804 = vpop.f32.mrf.mxu0
      %v805 = vadd.f32 0.0, %v804
      %806 = vmatmul.f32.gmra.mxu0 %v782
      %v807 = vpop.f32.mrf.mxu0
      %v808 = vadd.f32 0.0, %v807
      %809 = vdwg.mxu0
      %v810 = vld [vmem:[#allocation4] sm:$0xff]
      %v811 = vld [vmem:[#allocation4 + $0x8] sm:$0xff]
      %v812 = vld [vmem:[#allocation4 + $0x10] sm:$0xff]
      %v813 = vld [vmem:[#allocation4 + $0x18] sm:$0xff]
      %v814 = vld [vmem:[#allocation4 + $0x20] sm:$0xff]
      %v815 = vld [vmem:[#allocation4 + $0x28] sm:$0xff]
      %817 = vset.pattern.permute.xlu0 0
      %818 = vperm.xlu0 %817, %v612
      %v819 = vpop.permute.xlu0 %818
      %822 = vset.pattern.permute.xlu0 0
      %823 = vperm.xlu0 %822, %v614
      %v824 = vpop.permute.xlu0 %823
      %827 = vset.pattern.permute.xlu0 0
      %828 = vperm.xlu0 %827, %v616
      %v829 = vpop.permute.xlu0 %828
      %832 = vset.pattern.permute.xlu0 0
      %833 = vperm.xlu0 %832, %v618
      %v834 = vpop.permute.xlu0 %833
      %837 = vset.pattern.permute.xlu0 0
      %838 = vperm.xlu0 %837, %v620
      %v839 = vpop.permute.xlu0 %838
      %842 = vset.pattern.permute.xlu0 0
      %843 = vperm.xlu0 %842, %v622
      %v844 = vpop.permute.xlu0 %843
      %v846 = vmul.f32 %v819, %v810
      %v847 = vmul.f32 %v824, %v811
      %v848 = vmul.f32 %v829, %v812
      %v849 = vmul.f32 %v834, %v813
      %v850 = vmul.f32 %v839, %v814
      %v851 = vmul.f32 %v844, %v815
      %v852 = vadd.f32 %v846, %v741
      %v853 = vadd.f32 %v847, %v744
      %v854 = vadd.f32 %v848, %v773
      %v855 = vadd.f32 %v849, %v776
      %v856 = vadd.f32 %v850, %v805
      %v857 = vadd.f32 %v851, %v808
      %858 = vst.msk [vmem:[#allocation4] sm:$0xff] %vm480, %v852
      %859 = vst.msk [vmem:[#allocation4 + $0x8] sm:$0xff] %vm480, %v853
      %860 = vst.msk [vmem:[#allocation4 + $0x10] sm:$0xff] %vm480, %v854
      %861 = vst.msk [vmem:[#allocation4 + $0x18] sm:$0xff] %vm480, %v855
      %862 = vst.msk [vmem:[#allocation4 + $0x20] sm:$0xff] %vm480, %v856
      %863 = vst.msk [vmem:[#allocation4 + $0x28] sm:$0xff] %vm480, %v857
      %864 = vst.msk [vmem:[#allocation2] sm:$0xff] %vm707, %v599
      %865 = vst.msk [vmem:[#allocation2 + $0x8] sm:$0xff] %vm707, %v600
      %866 = vst.msk [vmem:[#allocation2 + $0x10] sm:$0xff] %vm707, %v601
      %867 = vst.msk [vmem:[#allocation2 + $0x18] sm:$0xff] %vm707, %v602
      %868 = vst.msk [vmem:[#allocation2 + $0x20] sm:$0xff] %vm707, %v603
      %869 = vst.msk [vmem:[#allocation2 + $0x28] sm:$0xff] %vm707, %v604
      // Predicated region
      $region37: #{tpu_custom_call.1} parent=31 // pred_check
        %p870 = pneg %p351
      $region38: #{tpu_custom_call.1} parent=31 // pred_check_branch
        %872 = sbr.rel (%p870) target = $region40
      $region39: #{tpu_custom_call.1} parent=31 // pred_region
        %v873 = vld [vmem:[#allocation3] sm:$0xff]
        %v874 = vld [vmem:[#allocation3 + $0x8] sm:$0xff]
        %v875 = vld [vmem:[#allocation3 + $0x10] sm:$0xff]
        %v876 = vld [vmem:[#allocation3 + $0x18] sm:$0xff]
        %v877 = vld [vmem:[#allocation3 + $0x20] sm:$0xff]
        %v878 = vld [vmem:[#allocation3 + $0x28] sm:$0xff]
        %v879 = vrcp.pop %v873
        %v880 = vrcp.pop %v874
        %v881 = vrcp.pop %v875
        %v882 = vrcp.pop %v876
        %v883 = vrcp.pop %v877
        %v884 = vrcp.pop %v878
        %v885 = vld [vmem:[#allocation4] sm:$0xff]
        %v886 = vld [vmem:[#allocation4 + $0x8] sm:$0xff]
        %v887 = vld [vmem:[#allocation4 + $0x10] sm:$0xff]
        %v888 = vld [vmem:[#allocation4 + $0x18] sm:$0xff]
        %v889 = vld [vmem:[#allocation4 + $0x20] sm:$0xff]
        %v890 = vld [vmem:[#allocation4 + $0x28] sm:$0xff]
        %892 = vset.pattern.permute.xlu0 0
        %893 = vperm.xlu0 %892, %v879
        %v894 = vpop.permute.xlu0 %893
        %897 = vset.pattern.permute.xlu0 0
        %898 = vperm.xlu0 %897, %v880
        %v899 = vpop.permute.xlu0 %898
        %902 = vset.pattern.permute.xlu0 0
        %903 = vperm.xlu0 %902, %v881
        %v904 = vpop.permute.xlu0 %903
        %907 = vset.pattern.permute.xlu0 0
        %908 = vperm.xlu0 %907, %v882
        %v909 = vpop.permute.xlu0 %908
        %912 = vset.pattern.permute.xlu0 0
        %913 = vperm.xlu0 %912, %v883
        %v914 = vpop.permute.xlu0 %913
        %917 = vset.pattern.permute.xlu0 0
        %918 = vperm.xlu0 %917, %v884
        %v919 = vpop.permute.xlu0 %918
        %v921 = vmul.f32 %v885, %v894
        %v922 = vmul.f32 %v886, %v899
        %v923 = vmul.f32 %v887, %v904
        %v924 = vmul.f32 %v888, %v909
        %v925 = vmul.f32 %v889, %v914
        %v926 = vmul.f32 %v890, %v919
        %927 = vxpose.xlu0.b32.start [1/16] %v921, 128
        %928 = vxpose.xlu0.b32.cont [2/16] %v922, 128
        %929 = vxpose.xlu0.b32.cont [3/16] 0.0, 128
        %930 = vxpose.xlu0.b32.cont [4/16] 0.0, 128
        %931 = vxpose.xlu0.b32.cont [5/16] 0.0, 128
        %932 = vxpose.xlu0.b32.cont [6/16] 0.0, 128
        %933 = vxpose.xlu0.b32.cont [7/16] 0.0, 128
        %934 = vxpose.xlu0.b32.cont [8/16] 0.0, 128
        %935 = vxpose.xlu0.b32.cont [9/16] 0.0, 128
        %936 = vxpose.xlu0.b32.cont [10/16] 0.0, 128
        %937 = vxpose.xlu0.b32.cont [11/16] 0.0, 128
        %938 = vxpose.xlu0.b32.cont [12/16] 0.0, 128
        %939 = vxpose.xlu0.b32.cont [13/16] 0.0, 128
        %940 = vxpose.xlu0.b32.cont [14/16] 0.0, 128
        %941 = vxpose.xlu0.b32.cont [15/16] 0.0, 128
        %942 = vxpose.xlu0.b32.end [16/16] 0.0, 128
        %v943 = vpop.trf.xlu0
        %v944 = vpop.trf.xlu0
        %v945 = vpop.trf.xlu0
        %v946 = vpop.trf.xlu0
        %v947 = vpop.trf.xlu0
        %v948 = vpop.trf.xlu0
        %v949 = vpop.trf.xlu0
        %v950 = vpop.trf.xlu0
        %v951 = vpop.trf.xlu0
        %v952 = vpop.trf.xlu0
        %v953 = vpop.trf.xlu0
        %v954 = vpop.trf.xlu0
        %v955 = vpop.trf.xlu0
        %v956 = vpop.trf.xlu0
        %v957 = vpop.trf.xlu0
        %v958 = vpop.trf.xlu0
        %959 = vxpose.xlu0.b32.start [1/16] %v923, 128
        %960 = vxpose.xlu0.b32.cont [2/16] %v924, 128
        %961 = vxpose.xlu0.b32.cont [3/16] 0.0, 128
        %962 = vxpose.xlu0.b32.cont [4/16] 0.0, 128
        %963 = vxpose.xlu0.b32.cont [5/16] 0.0, 128
        %964 = vxpose.xlu0.b32.cont [6/16] 0.0, 128
        %965 = vxpose.xlu0.b32.cont [7/16] 0.0, 128
        %966 = vxpose.xlu0.b32.cont [8/16] 0.0, 128
        %967 = vxpose.xlu0.b32.cont [9/16] 0.0, 128
        %968 = vxpose.xlu0.b32.cont [10/16] 0.0, 128
        %969 = vxpose.xlu0.b32.cont [11/16] 0.0, 128
        %970 = vxpose.xlu0.b32.cont [12/16] 0.0, 128
        %971 = vxpose.xlu0.b32.cont [13/16] 0.0, 128
        %972 = vxpose.xlu0.b32.cont [14/16] 0.0, 128
        %973 = vxpose.xlu0.b32.cont [15/16] 0.0, 128
        %974 = vxpose.xlu0.b32.end [16/16] 0.0, 128
        %v975 = vpop.trf.xlu0
        %v976 = vpop.trf.xlu0
        %v977 = vpop.trf.xlu0
        %v978 = vpop.trf.xlu0
        %v979 = vpop.trf.xlu0
        %v980 = vpop.trf.xlu0
        %v981 = vpop.trf.xlu0
        %v982 = vpop.trf.xlu0
        %v983 = vpop.trf.xlu0
        %v984 = vpop.trf.xlu0
        %v985 = vpop.trf.xlu0
        %v986 = vpop.trf.xlu0
        %v987 = vpop.trf.xlu0
        %v988 = vpop.trf.xlu0
        %v989 = vpop.trf.xlu0
        %v990 = vpop.trf.xlu0
        %991 = vxpose.xlu0.b32.start [1/16] %v925, 128
        %992 = vxpose.xlu0.b32.cont [2/16] %v926, 128
        %993 = vxpose.xlu0.b32.cont [3/16] 0.0, 128
        %994 = vxpose.xlu0.b32.cont [4/16] 0.0, 128
        %995 = vxpose.xlu0.b32.cont [5/16] 0.0, 128
        %996 = vxpose.xlu0.b32.cont [6/16] 0.0, 128
        %997 = vxpose.xlu0.b32.cont [7/16] 0.0, 128
        %998 = vxpose.xlu0.b32.cont [8/16] 0.0, 128
        %999 = vxpose.xlu0.b32.cont [9/16] 0.0, 128
        %1000 = vxpose.xlu0.b32.cont [10/16] 0.0, 128
        %1001 = vxpose.xlu0.b32.cont [11/16] 0.0, 128
        %1002 = vxpose.xlu0.b32.cont [12/16] 0.0, 128
        %1003 = vxpose.xlu0.b32.cont [13/16] 0.0, 128
        %1004 = vxpose.xlu0.b32.cont [14/16] 0.0, 128
        %1005 = vxpose.xlu0.b32.cont [15/16] 0.0, 128
        %1006 = vxpose.xlu0.b32.end [16/16] 0.0, 128
        %v1007 = vpop.trf.xlu0
        %v1008 = vpop.trf.xlu0
        %v1009 = vpop.trf.xlu0
        %v1010 = vpop.trf.xlu0
        %v1011 = vpop.trf.xlu0
        %v1012 = vpop.trf.xlu0
        %v1013 = vpop.trf.xlu0
        %v1014 = vpop.trf.xlu0
        %v1015 = vpop.trf.xlu0
        %v1016 = vpop.trf.xlu0
        %v1017 = vpop.trf.xlu0
        %v1018 = vpop.trf.xlu0
        %v1019 = vpop.trf.xlu0
        %v1020 = vpop.trf.xlu0
        %v1021 = vpop.trf.xlu0
        %v1022 = vpop.trf.xlu0
        %1023 = vst.msk [vmem:[%s349] sm:$0xff] %vm580, %v943
        %1024 = vst.msk [vmem:[%s349 + $0x8] sm:$0xff] %vm580, %v975
        %1025 = vst.msk [vmem:[%s349 + $0x10] sm:$0xff] %vm580, %v1007
      $region40: #{tpu_custom_call.1} parent=31 // pred_fallthru
        _
      %s1026 = smul.u32 3, %s21
      %p1027 = scmp.lt.s32.totalorder %s20, 1
      %s1028 = scalar_select %p1027, %s20, 1
      %p1029 = scmp.lt.s32.totalorder %s1026, 2
      %s1030 = scalar_select %p1029, %s1026, 2
      %p1031 = scmp.lt.s32.totalorder %s22, 0
      %s1032 = scalar_select %p1031, %s22, 0
      %s1033 = sadd.s32 %s1032, %s1030
      %s1034 = smul.addr %s1028, 3
      %s1035 = sadd.s32 %s1033, %s1034
      %s1036 = smul.addr %s1035, 8
      %s1037 = scalar_lea.vmem %s3, %s1036
      // Predicated region
      $region41: #{tpu_custom_call.1} parent=31 // pred_check
        %p1038 = pneg %p156
      $region42: #{tpu_custom_call.1} parent=31 // pred_check_branch
        %1040 = sbr.rel (%p1038) target = $region44
      $region43: #{tpu_custom_call.1} parent=31 // pred_region
        %s1041 = smul.u32 3, %s21
      $region44: #{tpu_custom_call.1} parent=31 // pred_fallthru
        _
    $region32: #{tpu_custom_call.1} parent=5 // pred_fallthru
      _
    %p1042 = scmp.le.s32.totalorder 2, %s9
    // Predicated region
    $region45: #{tpu_custom_call.1} parent=5 // pred_check
      %p1043 = pneg %p1042
    $region46: #{tpu_custom_call.1} parent=5 // pred_check_branch
      %1045 = sbr.rel (%p1043) target = $region48
    $region47: #{tpu_custom_call.1} parent=5 // pred_region
      %s1046 = ssub.s32 %s9, 2
      // Predicated region
      $region49: #{tpu_custom_call.1} parent=47 // pred_check
        %p1047 = pneg %p162
      $region50: #{tpu_custom_call.1} parent=47 // pred_check_branch
        %1049 = sbr.rel (%p1047) target = $region52
      $region51: #{tpu_custom_call.1} parent=47 // pred_region
        %s1050 = smul.u32 3, %s25
        %p1051 = scmp.lt.s32.totalorder %s24, 1
        %s1052 = scalar_select %p1051, %s24, 1
        %p1053 = scmp.lt.s32.totalorder %s1050, 2
        %s1054 = scalar_select %p1053, %s1050, 2
        %p1055 = scmp.lt.s32.totalorder %s26, 0
        %s1056 = scalar_select %p1055, %s26, 0
        %s1057 = sadd.s32 %s1056, %s1054
        %s1058 = smul.addr %s1052, 3
        %s1059 = sadd.s32 %s1057, %s1058
        %s1060 = smul.addr %s1059, 8
        %s1061 = scalar_lea.vmem %s3, %s1060
      $region52: #{tpu_custom_call.1} parent=47 // pred_fallthru
        _
    $region48: #{tpu_custom_call.1} parent=5 // pred_fallthru
      _
  $region6: #{tpu_custom_call.1} parent=0 // loop_footer
    %s13 = sadd.s32 1, %s9
  $region7: #{tpu_custom_call.1} parent=0 // loop_footer_branch
    %8 = sbr.rel target = $region3
  $region8: #{tpu_custom_call.1} parent=0 // loop_exit
    _

</llo_original>
